<compile_context>
chip_gen: v6e
topology: v6e:2x2x1
jax: 0.10.0
libtpu: 0.0.40
codegen_flags: <defaults>
</compile_context>

<pallas_src>
import functools

import jax
import jax.numpy as jnp
from jax import lax
from jax.experimental import pallas as pl
from jax.experimental.pallas import tpu as pltpu

FOCAL_GAMMA = 2.0          # fixed; exploited as an explicit square below
SMOOTHING = 0.1
CONFIDENCE = 1.0 - SMOOTHING
FOCAL_WEIGHT = 0.8
LS_WEIGHT = 0.2


def _round_up(x, m):
    return ((x + m - 1) // m) * m


def _vmem_limit_bytes():
    """Generation-aware scoped-VMEM budget (v5e/v6e: 128 MiB physical, v7x: 64 MiB)."""
    try:
        cap = int(pltpu.get_tpu_info().vmem_capacity_bytes)
    except Exception:
        cap = 64 << 20                         # conservative: assume v7x-sized VMEM
    return int(min(64 << 20, max(32 << 20, cap // 2)))


def _choose_tn(n, c, itemsize, vmem_limit):
    """Samples per tile (lane axis): sized by padded VMEM bytes, multiple of 128."""
    sub = {4: 8, 2: 16, 1: 32}.get(itemsize, 8)        # sublane packing of the dtype
    c_pad = _round_up(c, sub)
    per_sample = c_pad * itemsize + 8 * 4              # logits column + padded int32 target
    if 2 * per_sample * 128 > vmem_limit:
        # TODO(synk): add a class-axis grid with online (flash-style) softmax stats for
        # vocab-scale C that cannot fit a full class column in VMEM.
        raise NotImplementedError("class count too large for a single-block class axis")
    budget = vmem_limit // 4                            # per logits buffer (2x bufs + headroom)
    tn = budget // per_sample
    tn = max(128, min(tn, 512 * 1024))
    tn = min(tn, _round_up(n, 128))
    # keep >= 2 tiles when the batch is big enough so v7x can use both TensorCores
    if tn >= n and n > 256:
        tn = _round_up(pl.cdiv(n, 2), 128)
    return max(128, (tn // 128) * 128)


def _combined_loss_kernel(logits_ref, targets_ref, out_ref, *,
                          n_total, tn, c, focal_alpha):
    # class-major tile: (C, TN) with the batch on the 128-wide lane axis
    x = logits_ref[...].astype(jnp.float32)                       # (C, TN)
    t = targets_ref[...]                                          # (1, TN) int32

    # --- log-softmax statistics, reduced over the short class (sublane) axis ---
    m = jnp.max(x, axis=0, keepdims=True)                         # (1, TN)
    lse = m + jnp.log(jnp.sum(jnp.exp(x - m), axis=0, keepdims=True))
    sum_x = jnp.sum(x, axis=0, keepdims=True)                     # (1, TN)

    # target-logit gather: pure select (no convert + multiply), sum over classes
    cls = lax.broadcasted_iota(jnp.int32, x.shape, 0)
    x_t = jnp.sum(jnp.where(cls == t, x, 0.0), axis=0, keepdims=True)

    # per-sample cross entropy; clamp guards fp rounding (exact math gives >= 0)
    nll = jnp.maximum(lse - x_t, 0.0)                             # (1, TN)

    # --- FocalLoss: alpha is the broadcast constant, gamma == 2 -> explicit square ---
    pt = jnp.exp(-nll)
    omp = 1.0 - pt
    focal_per = focal_alpha * omp * omp * nll

    # --- LabelSmoothing:  -mean(logprobs) = lse - sum_x / C ---
    smooth_per = lse - sum_x * (1.0 / c)
    ls_per = CONFIDENCE * nll + SMOOTHING * smooth_per

    combined = FOCAL_WEIGHT * focal_per + LS_WEIGHT * ls_per       # (1, TN)

    # ragged last tile: mask samples past the true batch (OOB lanes hold garbage;
    # per-sample stats never mix lanes and select discards the masked branch)
    sample = pl.program_id(0) * tn + lax.broadcasted_iota(jnp.int32, (1, tn), 1)
    partial = jnp.sum(jnp.where(sample < n_total, combined, 0.0))

    # one tiny lane-dense block per tile (512 B writeback); wrapper reads [:, 0, 0]
    out_ref[...] = jnp.zeros((1, 1, 128), jnp.float32) + partial


def combined_loss(logits, targets, focal_alpha=0.8, tn=None, class_major=False):
    """logits: (N, C) float32/bfloat16 (or (C, N) with class_major=True),
    targets: (N,) int -> scalar float32."""
    if class_major:
        c, n = logits.shape
        logits_cm = logits
    else:
        n, c = logits.shape
        # single layout-plumbing transpose so the batch is lane-dense inside the kernel;
        # callers that already hold class-major logits can skip it via class_major=True.
        logits_cm = logits.T
    targets_2d = targets.astype(jnp.int32).reshape(1, n)

    itemsize = jnp.dtype(logits.dtype).itemsize
    vmem_limit = _vmem_limit_bytes()
    if tn is None:
        tn = _choose_tn(n, c, itemsize, vmem_limit)
    tn = max(128, (int(tn) // 128) * 128)

    num_tiles = pl.cdiv(n, tn)

    kernel = functools.partial(
        _combined_loss_kernel,
        n_total=n, tn=tn, c=c, focal_alpha=float(focal_alpha))

    partials = pl.pallas_call(
        kernel,
        out_shape=jax.ShapeDtypeStruct((num_tiles, 1, 128), jnp.float32),
        grid_spec=pltpu.PrefetchScalarGridSpec(
            num_scalar_prefetch=0,
            grid=(num_tiles,),
            in_specs=[
                pl.BlockSpec((c, tn), lambda i: (0, i)),
                pl.BlockSpec((1, tn), lambda i: (0, i)),
            ],
            out_specs=pl.BlockSpec((1, 1, 128), lambda i: (i, 0, 0)),
        ),
        compiler_params=pltpu.CompilerParams(
            dimension_semantics=("parallel",),
            vmem_limit_bytes=vmem_limit,
        ),
    )(logits_cm, targets_2d)

    return jnp.sum(partials[:, 0, 0]) / jnp.float32(n)


def combined_loss_ref(logits, targets, focal_alpha=0.8):
    """Pure-JAX reference for sanity checking."""
    logits = logits.astype(jnp.float32)
    logprobs = jax.nn.log_softmax(logits, axis=-1)
    nll = -jnp.take_along_axis(logprobs, targets[:, None].astype(jnp.int32),
                               axis=-1)[:, 0]
    pt = jnp.exp(-nll)
    focal = jnp.mean(focal_alpha * (1.0 - pt) ** FOCAL_GAMMA * nll)
    smooth = -jnp.mean(logprobs, axis=-1)
    ls = jnp.mean(CONFIDENCE * nll + SMOOTHING * smooth)
    return FOCAL_WEIGHT * focal + LS_WEIGHT * ls


if __name__ == "__main__":
    key = jax.random.PRNGKey(0)
    k1, k2, k3, k4 = jax.random.split(key, 4)

    # cross_entropy-style inputs implied by the module: (N, C) logits + (N,) labels
    N, C = 37, 4                      # non-multiple-of-128 batch exercises the ragged mask
    logits = jax.random.normal(k1, (N, C), dtype=jnp.float32)
    targets = jax.random.randint(k2, (N,), 0, C, dtype=jnp.int32)

    loss = combined_loss(logits, targets)
    jax.block_until_ready(loss)
    ref = combined_loss_ref(logits, targets)
    assert jnp.allclose(loss, ref, atol=1e-5, rtol=1e-5), (loss, ref)

    # multi-tile path: force small lane tiles so the grid has several (ragged) steps
    N2, C2 = 293, 4
    logits2 = jax.random.normal(k3, (N2, C2), dtype=jnp.float32)
    targets2 = jax.random.randint(k4, (N2,), 0, C2, dtype=jnp.int32)
    loss2 = combined_loss(logits2, targets2, tn=128)
    jax.block_until_ready(loss2)
    ref2 = combined_loss_ref(logits2, targets2)
    assert jnp.allclose(loss2, ref2, atol=1e-5, rtol=1e-5), (loss2, ref2)

    # bf16 logits (halved DMA bytes; math stays f32 in-kernel)
    loss3 = combined_loss(logits2.astype(jnp.bfloat16), targets2)
    jax.block_until_ready(loss3)
    ref3 = combined_loss_ref(logits2.astype(jnp.bfloat16), targets2)
    assert jnp.allclose(loss3, ref3, atol=1e-4, rtol=1e-4), (loss3, ref3)

    print("KERNEL_OK")
</pallas_src>

<mosaic_0001>
module attributes {stable_mosaic.version = 11 : i64} {
  func.func @_combined_loss_kernel(%arg0: i32, %arg1: memref<4x128xf32, #tpu.memory_space<vmem>>, %arg2: memref<1x128xi32, #tpu.memory_space<vmem>>, %arg3: memref<1x1x128xf32, #tpu.memory_space<vmem>>) attributes {dimension_semantics = [#tpu.dimension_semantics<parallel>], iteration_bounds = array<i64: 1>, scalar_prefetch = 0 : i64, scratch_operands = 0 : i64, tpu.core_type = #tpu.core_type<tc>, window_params = [{transform_indices = @transform_0, window_bounds = array<i64: 4, 128>}, {transform_indices = @transform_1, window_bounds = array<i64: 1, 128>}, {transform_indices = @transform_2, window_bounds = array<i64: 1, 1, 128>}]} {
    %c0 = arith.constant 0 : index
    %c0_0 = arith.constant 0 : index
    %0 = vector.load %arg1[%c0, %c0_0] : memref<4x128xf32, #tpu.memory_space<vmem>>, vector<4x128xf32>
    %c0_1 = arith.constant 0 : index
    %c0_2 = arith.constant 0 : index
    %1 = vector.load %arg2[%c0_1, %c0_2] : memref<1x128xi32, #tpu.memory_space<vmem>>, vector<1x128xi32>
    %cst = arith.constant dense<0xFF800000> : vector<128xf32>
    %2 = vector.multi_reduction <maximumf>, %0, %cst [0] : vector<4x128xf32> to vector<128xf32>
    %3 = vector.shape_cast %2 : vector<128xf32> to vector<1x128xf32>
    %4 = vector.broadcast %3 : vector<1x128xf32> to vector<4x128xf32>
    %5 = arith.subf %0, %4 : vector<4x128xf32>
    %6 = math.exp %5 : vector<4x128xf32>
    %cst_3 = arith.constant dense<0.000000e+00> : vector<128xf32>
    %7 = vector.multi_reduction <add>, %6, %cst_3 [0] : vector<4x128xf32> to vector<128xf32>
    %8 = vector.shape_cast %7 : vector<128xf32> to vector<1x128xf32>
    %9 = math.log %8 : vector<1x128xf32>
    %10 = arith.addf %3, %9 : vector<1x128xf32>
    %cst_4 = arith.constant dense<0.000000e+00> : vector<128xf32>
    %11 = vector.multi_reduction <add>, %0, %cst_4 [0] : vector<4x128xf32> to vector<128xf32>
    %12 = vector.shape_cast %11 : vector<128xf32> to vector<1x128xf32>
    %13 = tpu.iota {dimensions = array<i32: 0>} : vector<4x128xi32>
    %14 = vector.broadcast %1 : vector<1x128xi32> to vector<4x128xi32>
    %15 = arith.cmpi eq, %13, %14 : vector<4x128xi32>
    %cst_5 = arith.constant 0.000000e+00 : f32
    %16 = vector.broadcast %cst_5 : f32 to vector<4x128xf32>
    %17 = arith.select %15, %0, %16 : vector<4x128xi1>, vector<4x128xf32>
    %cst_6 = arith.constant dense<0.000000e+00> : vector<128xf32>
    %18 = vector.multi_reduction <add>, %17, %cst_6 [0] : vector<4x128xf32> to vector<128xf32>
    %19 = vector.shape_cast %18 : vector<128xf32> to vector<1x128xf32>
    %20 = arith.subf %10, %19 : vector<1x128xf32>
    %cst_7 = arith.constant 0.000000e+00 : f32
    %21 = vector.broadcast %cst_7 : f32 to vector<1x128xf32>
    %22 = arith.maximumf %20, %21 : vector<1x128xf32>
    %cst_8 = arith.constant 0.000000e+00 : f32
    %23 = vector.broadcast %cst_8 : f32 to vector<1x128xf32>
    %24 = arith.subf %23, %22 : vector<1x128xf32>
    %25 = math.exp %24 : vector<1x128xf32>
    %cst_9 = arith.constant 1.000000e+00 : f32
    %26 = vector.broadcast %cst_9 : f32 to vector<1x128xf32>
    %27 = arith.subf %26, %25 : vector<1x128xf32>
    %cst_10 = arith.constant 8.000000e-01 : f32
    %28 = vector.broadcast %cst_10 : f32 to vector<1x128xf32>
    %29 = arith.mulf %28, %27 : vector<1x128xf32>
    %30 = arith.mulf %29, %27 : vector<1x128xf32>
    %31 = arith.mulf %30, %22 : vector<1x128xf32>
    %cst_11 = arith.constant 2.500000e-01 : f32
    %32 = vector.broadcast %cst_11 : f32 to vector<1x128xf32>
    %33 = arith.mulf %12, %32 : vector<1x128xf32>
    %34 = arith.subf %10, %33 : vector<1x128xf32>
    %cst_12 = arith.constant 0.899999976 : f32
    %35 = vector.broadcast %cst_12 : f32 to vector<1x128xf32>
    %36 = arith.mulf %35, %22 : vector<1x128xf32>
    %cst_13 = arith.constant 1.000000e-01 : f32
    %37 = vector.broadcast %cst_13 : f32 to vector<1x128xf32>
    %38 = arith.mulf %37, %34 : vector<1x128xf32>
    %39 = arith.addf %36, %38 : vector<1x128xf32>
    %cst_14 = arith.constant 8.000000e-01 : f32
    %40 = vector.broadcast %cst_14 : f32 to vector<1x128xf32>
    %41 = arith.mulf %40, %31 : vector<1x128xf32>
    %cst_15 = arith.constant 2.000000e-01 : f32
    %42 = vector.broadcast %cst_15 : f32 to vector<1x128xf32>
    %43 = arith.mulf %42, %39 : vector<1x128xf32>
    %44 = arith.addf %41, %43 : vector<1x128xf32>
    %c128_i32 = arith.constant 128 : i32
    %45 = arith.muli %arg0, %c128_i32 : i32
    %46 = tpu.iota {dimensions = array<i32: 1>} : vector<1x128xi32>
    %47 = vector.broadcast %45 : i32 to vector<1x128xi32>
    %48 = arith.addi %47, %46 : vector<1x128xi32>
    %c37_i32 = arith.constant 37 : i32
    %49 = vector.broadcast %c37_i32 : i32 to vector<1x128xi32>
    %50 = arith.cmpi slt, %48, %49 : vector<1x128xi32>
    %cst_16 = arith.constant 0.000000e+00 : f32
    %51 = vector.broadcast %cst_16 : f32 to vector<1x128xf32>
    %52 = arith.select %50, %44, %51 : vector<1x128xi1>, vector<1x128xf32>
    %53 = vector.shape_cast %52 : vector<1x128xf32> to vector<1x1x128xf32>
    %cst_17 = arith.constant dense<0.000000e+00> : vector<1xf32>
    %54 = vector.multi_reduction <add>, %53, %cst_17 [1, 2] : vector<1x1x128xf32> to vector<1xf32>
    %55 = vector.shape_cast %54 : vector<1xf32> to vector<1x1x1xf32>
    %56 = vector.extract %55[0, 0, 0] : f32 from vector<1x1x1xf32>
    %cst_18 = arith.constant 0.000000e+00 : f32
    %57 = vector.broadcast %cst_18 : f32 to vector<1x1x128xf32>
    %58 = vector.broadcast %56 : f32 to vector<1x1x128xf32>
    %59 = arith.addf %57, %58 : vector<1x1x128xf32>
    %c0_19 = arith.constant 0 : index
    %c0_20 = arith.constant 0 : index
    %c0_21 = arith.constant 0 : index
    %60 = vector.load %arg3[%c0_19, %c0_20, %c0_21] : memref<1x1x128xf32, #tpu.memory_space<vmem>>, vector<1x1x128xf32>
    tpu.vector_store %arg3[%c0_19, %c0_20, %c0_21], %59 {strides = array<i32>} : memref<1x1x128xf32, #tpu.memory_space<vmem>>, vector<1x1x128xf32>,
    return
  }
  func.func @transform_0(%arg0: i32) -> (i32, i32) {
    %c0_i32 = arith.constant 0 : i32
    %c0_i32_0 = arith.constant 0 : i32
    return %c0_i32, %arg0 : i32, i32
  }
  func.func @transform_1(%arg0: i32) -> (i32, i32) {
    %c0_i32 = arith.constant 0 : i32
    %c0_i32_0 = arith.constant 0 : i32
    return %c0_i32, %arg0 : i32, i32
  }
  func.func @transform_2(%arg0: i32) -> (i32, i32, i32) {
    %c0_i32 = arith.constant 0 : i32
    %c0_i32_0 = arith.constant 0 : i32
    %c0_i32_1 = arith.constant 0 : i32
    return %arg0, %c0_i32, %c0_i32_0 : i32, i32, i32
  }
}

</mosaic_0001>

<llo_original>
// kernel: tpu_custom_call.1
$region0: #{tpu_custom_call.1}
  #allocation0 [shape = 'u32[]', space=smem, size = 0x4, offset = 0x4, fixed_abs, tag = 'smem constant byte address 0x4 - core index']
  #allocation1 [shape = 'u32[144,128]{1,0:T(1,128)}', space=vmem, size = 0x12000, scoped, tag = 'internal scratch']
  %s0 = inlined_call_operand.hbm [shape: f32[4,37], index: 0, kind: input, shape index: {}]
  %s1 = inlined_call_operand.vmem [shape: s32[1,37], index: 1, kind: input, shape index: {}]
  %s2 = inlined_call_operand.hbm [shape: f32[1,1,128], index: 2, kind: output, shape index: {}]
  %s3 = sld [smem:[#allocation0]]
  $region22: #{tpu_custom_call.1} parent=0
    _
  %s5 = ssub.s32 1, %s3
  %s6 = scalar_select 0, %s5, %s3
  $region1: #{tpu_custom_call.1} parent=0
    #allocation2 [shape = 'u8[2048]{0}', space=vmem, size = 0x800, scoped, tag = 'input window, operand 0, single buffered']
    #allocation3 [shape = 's32[1]{0}', space=sflag, size = 0x4, scoped, tag = 'scoped memory for tpu_custom_call.1']
    #allocation4 [shape = 's32[1]{0}', space=sflag, size = 0x4, scoped, tag = 'scoped memory for tpu_custom_call.1']
    #allocation5 [shape = 'u8[512]{0}', space=vmem, size = 0x400, scoped, tag = 'output window, operand 0, single buffered']
    %7 = vsyncpa [#allocation3], 0
    %8 = vsyncpa [#allocation4], 0
    // Predicated region
    $region2: #{tpu_custom_call.1} parent=1 // pred_check
      _
    $region3: #{tpu_custom_call.1} parent=1 // pred_check_branch
      %10 = sbr.rel (0) target = $region5
    $region4: #{tpu_custom_call.1} parent=1 // pred_region
      %s12 = ssub.s32 64, 64
      %13 = vsyncadd [#allocation3], %s12
      %s15 = sshll.u32 [#allocation2], 4
      %s16 = int_to_ptr.vmem [resolvable:$true] %s15
      %18 = dma.hbm_to_vmem [thread:$0]  %s0, 64, %s16, [#allocation3]
    $region5: #{tpu_custom_call.1} parent=1 // pred_fallthru
      _
    // Predicated region
    $region6: #{tpu_custom_call.1} parent=1 // pred_check
      _
    $region7: #{tpu_custom_call.1} parent=1 // pred_check_branch
      %20 = sbr.rel (0) target = $region9
    $region8: #{tpu_custom_call.1} parent=1 // pred_region
      _
    $region9: #{tpu_custom_call.1} parent=1 // pred_fallthru
      _
    // Predicated region
    $region10: #{tpu_custom_call.1} parent=1 // pred_check
      _
    $region11: #{tpu_custom_call.1} parent=1 // pred_check_branch
      %22 = sbr.rel (0) target = $region13
    $region12: #{tpu_custom_call.1} parent=1 // pred_region
      %23 = dma.done [#allocation3], 64
    $region13: #{tpu_custom_call.1} parent=1 // pred_fallthru
      _
    %v24 = vld [vmem:[#allocation2] sm:$0xf]
    %v25 = vld [vmem:[%s1] sm:$0x1]
    %vm26 = vcmask 1043456
    %v27 = vsel %vm26, %v24, -inf
    %v28 = vrot.slane %v27, 4
    %v29 = vmax.f32 %v27, %v28
    %v30 = vrot.slane %v29, 2
    %v31 = vmax.f32 %v29, %v30
    %v32 = vrot.slane %v31, 1
    %v33 = vmax.f32 %v31, %v32
    %v34 = vsub.f32 %v24, %v33
    %v35 = vmul.f32 %v34, 1.442695
    %v36 = vpow.pop %v35
    %v37 = vsel %vm26, %v36, 0.0
    %v38 = vrot.slane %v37, 4
    %v39 = vadd.f32 %v37, %v38
    %v40 = vrot.slane %v39, 2
    %v41 = vadd.f32 %v39, %v40
    %v42 = vrot.slane %v41, 1
    %v43 = vadd.f32 %v41, %v42
    %v44 = vlog2.pop %v43
    %v45 = vmul.f32 %v44, 0.6931472
    %v46 = vadd.f32 %v33, %v45
    %v47 = vsel %vm26, %v24, 0.0
    %v48 = vrot.slane %v47, 4
    %v49 = vadd.f32 %v47, %v48
    %v50 = vrot.slane %v49, 2
    %v51 = vadd.f32 %v49, %v50
    %v52 = vrot.slane %v51, 1
    %v53 = vadd.f32 %v51, %v52
    %v54 = vlaneseq
    %v55 = vshrl.u32 %v54, 7
    %v56 = vlaneseq
    %v57 = vshrl.u32 %v56, 7
    %v58 = vsub.s32 0, %v57
    %v59 = vrot.slane %v25, %v58
    %vm60 = vcmp.eq.s32.totalorder %v55, %v59
    %v61 = vsel %vm60, %v24, 0.0
    %v62 = vsel %vm26, %v61, 0.0
    %v63 = vrot.slane %v62, 4
    %v64 = vadd.f32 %v62, %v63
    %v65 = vrot.slane %v64, 2
    %v66 = vadd.f32 %v64, %v65
    %v67 = vrot.slane %v66, 1
    %v68 = vadd.f32 %v66, %v67
    %v69 = vsub.f32 %v46, %v68
    %v70 = vmax.f32 %v69, 0.0
    %v71 = vsub.f32 0.0, %v70
    %v72 = vmul.f32 %v71, 1.442695
    %v73 = vpow.pop %v72
    %v74 = vsub.f32 1.0, %v73
    %v75 = vmul.f32 %v74, 0.8
    %v76 = vmul.f32 %v75, %v74
    %v77 = vmul.f32 %v76, %v70
    %v78 = vmul.f32 %v53, 0.25
    %v79 = vsub.f32 %v46, %v78
    %v80 = vmul.f32 %v70, 0.9
    %v81 = vmul.f32 %v79, 0.1
    %v82 = vadd.f32 %v80, %v81
    %v83 = vmul.f32 %v77, 0.8
    %v84 = vmul.f32 %v82, 0.2
    %v85 = vadd.f32 %v83, %v84
    %s86 = smul.u32 0, 128
    %v87 = vlaneseq
    %v88 = vand.u32 %v87, 127
    %v89 = vstv %s86
    %v90 = vadd.s32 %v89, %v88
    %vm91 = vcmp.lt.s32.totalorder %v90, 37
    %v92 = vsel %vm91, %v85, 0.0
    %vm93 = vcmask 1040384
    %v94 = vsel %vm93, %v92, 0.0
    %95 = vadd.xlane.f32.xlu0 %v94
    %v96 = vpop.xlane.xlu0 %95
    %v97 = vrot.slane %v96, 4
    %v98 = vadd.f32 %v96, %v97
    %v99 = vrot.slane %v98, 2
    %v100 = vadd.f32 %v98, %v99
    %v101 = vrot.slane %v100, 1
    %v102 = vadd.f32 %v100, %v101
    %s103 = vtos %v102
    %v104 = vstv %s103
    %v105 = vadd.f32 %v104, 0.0
    %106 = vst [vmem:[#allocation5] sm:$0x1] %v105
    // Predicated region
    $region14: #{tpu_custom_call.1} parent=1 // pred_check
      _
    $region15: #{tpu_custom_call.1} parent=1 // pred_check_branch
      %108 = sbr.rel (0) target = $region17
    $region16: #{tpu_custom_call.1} parent=1 // pred_region
      %s110 = ssub.s32 16, 16
      %111 = vsyncadd [#allocation4], %s110
      %s113 = sshll.u32 [#allocation5], 4
      %s114 = int_to_ptr.vmem [resolvable:$true] %s113
      %116 = dma.vmem_to_hbm [thread:$0]  %s114, 16, %s2, [#allocation4]
    $region17: #{tpu_custom_call.1} parent=1 // pred_fallthru
      _
    // Predicated region
    $region18: #{tpu_custom_call.1} parent=1 // pred_check
      _
    $region19: #{tpu_custom_call.1} parent=1 // pred_check_branch
      %118 = sbr.rel (0) target = $region21
    $region20: #{tpu_custom_call.1} parent=1 // pred_region
      %119 = dma.done [#allocation4], 16
    $region21: #{tpu_custom_call.1} parent=1 // pred_fallthru
      _
    %120 = vsyncpa [#allocation3], 1
    %121 = vsyncpa [#allocation4], 1

</llo_original>
